<compile_context>
chip_gen: v7x
topology: tpu7x:2x2x1
jax: 0.10.0
libtpu: 0.0.40
codegen_flags: <defaults>
</compile_context>

<pallas_src>
import functools

import numpy as np
import jax
import jax.numpy as jnp
from jax.experimental import pallas as pl
from jax.experimental.pallas import tpu as pltpu


# ------------------------------ Pallas kernel -------------------------------

def _fused_predict_kernel(key_cat_ref,            # SMEM (K_pad,) int32 (prefetch)
                          cat_ids_ref,            # VMEM (B, 1) int32   (resident)
                          x_ref,                  # VMEM (B, D) f32     (resident)
                          g_ref, beta_ref,        # VMEM (1, D) f32     (resident)
                          w1_ref,                 # VMEM (1, D, Kb*H) bf16 (streamed)
                          b1_ref,                 # VMEM (n_blocks, 1, Kb*H) f32 (resident)
                          w2_ref,                 # VMEM (Kb, H, A_pad) bf16 (streamed)
                          b2_ref,                 # VMEM (K_pad, 1, A_pad) f32 (resident)
                          o_ref,                  # VMEM (Kb, B, A_pad) f32
                          *, kb, hid):
    blk = pl.program_id(0)

    # ---- LayerNorm (two-pass variance), ONCE per grid step (per Kb keys) ----
    x = x_ref[...].astype(jnp.float32)
    mean = jnp.mean(x, axis=-1, keepdims=True)
    xc = x - mean
    var = jnp.mean(xc * xc, axis=-1, keepdims=True)
    xn = xc * jax.lax.rsqrt(var + 1e-5) * g_ref[...] + beta_ref[...]
    xn_bf = xn.astype(jnp.bfloat16)                 # one cast, reused by all keys

    # ---- first Linear of all Kb keys as one wide MXU dot: (B,D)@(D,Kb*H) ----
    h = jnp.dot(xn_bf, w1_ref[0], preferred_element_type=jnp.float32)
    h = h + b1_ref[blk]                             # (1, Kb*H) broadcast add
    h = jnp.maximum(h, 0.0)                         # ReLU
    # TODO(synk): nn.Dropout(0.2) omitted (eval/inference semantics: identity).
    h_bf = h.astype(jnp.bfloat16)                   # one cast for all Kb 2nd dots

    # ---- per-key second Linear + category mask (static unroll over Kb) ----
    for kk in range(kb):
        gk = blk * kb + kk
        y = jnp.dot(h_bf[:, kk * hid:(kk + 1) * hid], w2_ref[kk],
                    preferred_element_type=jnp.float32)
        y = y + b2_ref[gk]                          # (1, A_pad) broadcast add
        mask = cat_ids_ref[...] == key_cat_ref[gk]  # (B, 1) bool
        o_ref[kk] = jnp.where(mask, y, -jnp.inf)


# ------------------------------- JAX wrapper ---------------------------------

@jax.jit
def fused_predict(key_cat_ids, cat_ids, x, gamma, beta, w1b, b1b, w2s, b2s):
    n_blocks, D, kbh = w1b.shape
    k_pad, H, a_pad = w2s.shape
    kb = k_pad // n_blocks
    B = x.shape[0]

    kernel = functools.partial(_fused_predict_kernel, kb=kb, hid=H)

    grid_spec = pltpu.PrefetchScalarGridSpec(
        num_scalar_prefetch=1,                      # key_cat_ids -> SMEM
        grid=(n_blocks,),
        in_specs=[
            pl.BlockSpec((B, 1), lambda b, kc: (0, 0)),              # cat_ids
            pl.BlockSpec((B, D), lambda b, kc: (0, 0)),              # x (resident)
            pl.BlockSpec((1, D), lambda b, kc: (0, 0)),              # gamma
            pl.BlockSpec((1, D), lambda b, kc: (0, 0)),              # beta
            pl.BlockSpec((1, D, kbh), lambda b, kc: (b, 0, 0)),      # w1 (streamed)
            pl.BlockSpec((n_blocks, 1, kbh), lambda b, kc: (0, 0, 0)),   # b1 (resident)
            pl.BlockSpec((kb, H, a_pad), lambda b, kc: (b, 0, 0)),   # w2 (streamed)
            pl.BlockSpec((k_pad, 1, a_pad), lambda b, kc: (0, 0, 0)),    # b2 (resident)
        ],
        out_specs=pl.BlockSpec((kb, B, a_pad), lambda b, kc: (b, 0, 0)),
    )

    return pl.pallas_call(
        kernel,
        out_shape=jax.ShapeDtypeStruct((k_pad, B, a_pad), jnp.float32),
        grid_spec=grid_spec,
        compiler_params=pltpu.CompilerParams(
            dimension_semantics=("parallel",),      # key blocks are independent
        ),
    )(key_cat_ids, cat_ids, x, gamma, beta, w1b, b1b, w2s, b2s)


# --------------------------- Module-level wrapper ----------------------------

class CategoryAwareAttributePredictorPallas:
    def __init__(self, clip_dim, hidden_dim, category_attributes, attribute_dims,
                 key, kb=4):
        self.clip_dim = clip_dim
        self.hidden_dim = hidden_dim
        self.category_attributes = category_attributes
        self.cat_to_id = {c: i for i, c in enumerate(category_attributes.keys())}

        # LayerNorm params (PyTorch default init: gamma=1, beta=0).
        self.ln_gamma = jnp.ones((1, clip_dim), jnp.float32)
        self.ln_beta = jnp.zeros((1, clip_dim), jnp.float32)

        # Enumerate valid keys (same order as PyTorch's ModuleDict construction).
        valid_keys = []
        for category, attrs in category_attributes.items():
            for attr_name in attrs.keys():
                k_name = f"{category}_{attr_name}"
                if k_name in attribute_dims:
                    valid_keys.append((k_name, category, attribute_dims[k_name]))

        K = len(valid_keys)
        self.kb = kb
        self.k_pad = ((K + kb - 1) // kb) * kb            # pad with dummy keys
        n_blocks = self.k_pad // kb
        a_max = max(a for _, _, a in valid_keys)
        self.a_pad = max(128, ((a_max + 127) // 128) * 128)   # lane-dense output

        w1_all = np.zeros((self.k_pad, clip_dim, hidden_dim), np.float32)
        b1_all = np.zeros((self.k_pad, hidden_dim), np.float32)
        w2_all = np.zeros((self.k_pad, hidden_dim, self.a_pad), np.float32)
        b2_all = np.zeros((self.k_pad, self.a_pad), np.float32)
        kcat = np.full((self.k_pad,), -2, np.int32)       # dummies match nothing

        self.key_names, self.key_cats, self.key_adims = [], [], []
        for i, (k_name, category, a_dim) in enumerate(valid_keys):
            key, k1, k2, k3, k4 = jax.random.split(key, 5)
            w1_all[i] = (np.asarray(jax.random.normal(k1, (clip_dim, hidden_dim),
                                                      jnp.float32))
                         / np.sqrt(clip_dim))
            b1_all[i] = np.asarray(jax.random.normal(k2, (hidden_dim,),
                                                     jnp.float32)) * 0.01
            w2_all[i, :, :a_dim] = (np.asarray(
                jax.random.normal(k3, (hidden_dim, a_dim), jnp.float32))
                / np.sqrt(hidden_dim))
            b2_all[i, :a_dim] = np.asarray(jax.random.normal(k4, (a_dim,),
                                                             jnp.float32)) * 0.01
            kcat[i] = self.cat_to_id[category]
            self.key_names.append(k_name)
            self.key_cats.append(category)
            self.key_adims.append(a_dim)

        # Keep f32 copies around for the numerics check in __main__.
        self.dbg_w1, self.dbg_b1 = w1_all, b1_all
        self.dbg_w2, self.dbg_b2 = w2_all, b2_all

        # w1 re-layout: (K_pad, D, H) -> (n_blocks, D, Kb*H) so the first Linear
        # of all Kb keys of a block is one wide dot with a fully utilized N dim.
        w1b = w1_all.reshape(n_blocks, kb, clip_dim, hidden_dim)
        w1b = np.transpose(w1b, (0, 2, 1, 3)).reshape(n_blocks, clip_dim,
                                                      kb * hidden_dim)
        b1b = b1_all.reshape(n_blocks, 1, kb * hidden_dim)
        b2b = b2_all.reshape(self.k_pad, 1, self.a_pad)

        # bf16 weight stream (halves weight DMA; MXU accumulates in f32).
        self.w1b = jnp.asarray(w1b, jnp.bfloat16)            # (n_blocks, D, Kb*H)
        self.b1b = jnp.asarray(b1b, jnp.float32)              # (n_blocks, 1, Kb*H)
        self.w2s = jnp.asarray(w2_all, jnp.bfloat16)           # (K_pad, H, A_pad)
        self.b2s = jnp.asarray(b2b, jnp.float32)               # (K_pad, 1, A_pad)
        self.key_cat_ids = jnp.asarray(kcat)                   # (K_pad,)

    def __call__(self, clip_features, categories):
        B = clip_features.shape[0]
        # Row category ids (host-side string -> int; -1 = unknown, matches nothing).
        cat_ids = np.full((B, 1), -1, np.int32)
        for i, c in enumerate(categories):
            cat_ids[i, 0] = self.cat_to_id.get(c, -1)

        out = fused_predict(self.key_cat_ids, jnp.asarray(cat_ids),
                            jnp.asarray(clip_features, jnp.float32),
                            self.ln_gamma, self.ln_beta,
                            self.w1b, self.b1b, self.w2s, self.b2s)

        # TODO(synk): keys whose category is absent from the batch still stream
        # weights and compute (results dropped here); for category-sparse batches
        # gather present-key weight slices host-side (or prefetch a per-block
        # remap vector) to skip those grid blocks entirely.
        present = set(categories)
        results = {}
        for i, name in enumerate(self.key_names):
            if self.key_cats[i] in present:
                results[name] = out[i, :, :self.key_adims[i]]
        return results


# --------------------------------- reference ---------------------------------

def _reference(x, gamma, beta, w1_bf16, b1, w2_bf16, b2, mask_rows):
    x = x.astype(jnp.float32)
    mean = jnp.mean(x, axis=-1, keepdims=True)
    xc = x - mean
    var = jnp.mean(xc * xc, axis=-1, keepdims=True)
    xn = xc * jax.lax.rsqrt(var + 1e-5) * gamma + beta
    h = jnp.dot(xn.astype(jnp.bfloat16), w1_bf16,
                preferred_element_type=jnp.float32) + b1
    h = jnp.maximum(h, 0.0)
    y = jnp.dot(h.astype(jnp.bfloat16), w2_bf16,
                preferred_element_type=jnp.float32) + b2
    return jnp.where(mask_rows, y, -jnp.inf)


# ------------------------------------ main ------------------------------------

if __name__ == "__main__":
    # Small synthetic shapes (module default clip_dim=512, hidden=[512] shrunk).
    B = 8
    CLIP_DIM = 64
    HIDDEN = 64

    category_attributes = {
        "dress": {"color": None, "sleeve": None},
        "shoe": {"material": None},
    }
    attribute_dims = {"dress_color": 6, "dress_sleeve": 4, "shoe_material": 5}
    categories = ["dress", "shoe", "dress", "shoe", "dress", "dress", "shoe", "dress"]

    key = jax.random.PRNGKey(0)
    key, kx, kp = jax.random.split(key, 3)
    clip_features = jax.random.normal(kx, (B, CLIP_DIM), jnp.float32)

    model = CategoryAwareAttributePredictorPallas(
        CLIP_DIM, HIDDEN, category_attributes, attribute_dims, kp, kb=4)

    results = model(clip_features, categories)
    for v in results.values():
        jax.block_until_ready(v)

    # ---- sanity checks: keys, shapes, masking pattern, numerics ----
    assert set(results.keys()) == {"dress_color", "dress_sleeve", "shoe_material"}
    assert results["dress_color"].shape == (B, 6)
    assert results["dress_sleeve"].shape == (B, 4)
    assert results["shoe_material"].shape == (B, 5)

    row_cat_ids = np.array([model.cat_to_id[c] for c in categories])
    for i, name in enumerate(model.key_names):
        if name not in results:
            continue
        a = model.key_adims[i]
        mask_rows = jnp.asarray(
            (row_cat_ids == model.cat_to_id[model.key_cats[i]]).reshape(B, 1))
        ref = _reference(
            clip_features, model.ln_gamma, model.ln_beta,
            jnp.asarray(model.dbg_w1[i], jnp.bfloat16),
            jnp.asarray(model.dbg_b1[i:i + 1], jnp.float32),
            jnp.asarray(model.dbg_w2[i, :, :a], jnp.bfloat16),
            jnp.asarray(model.dbg_b2[i:i + 1, :a], jnp.float32),
            mask_rows)
        got = np.asarray(results[name])
        ref = np.asarray(ref)
        # -inf rows exactly where the category does not match.
        for r in range(B):
            if categories[r] == model.key_cats[i]:
                assert np.all(np.isfinite(got[r])), name
            else:
                assert np.all(np.isneginf(got[r])), name
        assert np.allclose(ref, got, rtol=2e-2, atol=2e-2), name

    print("KERNEL_OK")
</pallas_src>

<mosaic_0001>
module attributes {stable_mosaic.version = 11 : i64} {
  func.func @_fused_predict_kernel(%arg0: i32, %arg1: memref<4xi32, #tpu.memory_space<smem>>, %arg2: memref<8x1xi32, #tpu.memory_space<vmem>>, %arg3: memref<8x64xf32, #tpu.memory_space<vmem>>, %arg4: memref<1x64xf32, #tpu.memory_space<vmem>>, %arg5: memref<1x64xf32, #tpu.memory_space<vmem>>, %arg6: memref<1x64x256xbf16, #tpu.memory_space<vmem>>, %arg7: memref<1x1x256xf32, #tpu.memory_space<vmem>>, %arg8: memref<4x64x128xbf16, #tpu.memory_space<vmem>>, %arg9: memref<4x1x128xf32, #tpu.memory_space<vmem>>, %arg10: memref<4x8x128xf32, #tpu.memory_space<vmem>>) attributes {dimension_semantics = [#tpu.dimension_semantics<parallel>], iteration_bounds = array<i64: 1>, scalar_prefetch = 1 : i64, scratch_operands = 0 : i64, tpu.core_type = #tpu.core_type<tc>, window_params = [{pipeline_mode = #tpu.pipeline_mode<synchronous>, transform_indices = @transform_0, window_bounds = array<i64: 8, 1>}, {pipeline_mode = #tpu.pipeline_mode<synchronous>, transform_indices = @transform_1, window_bounds = array<i64: 8, 64>}, {pipeline_mode = #tpu.pipeline_mode<synchronous>, transform_indices = @transform_2, window_bounds = array<i64: 1, 64>}, {pipeline_mode = #tpu.pipeline_mode<synchronous>, transform_indices = @transform_3, window_bounds = array<i64: 1, 64>}, {transform_indices = @transform_4, window_bounds = array<i64: 1, 64, 256>}, {pipeline_mode = #tpu.pipeline_mode<synchronous>, transform_indices = @transform_5, window_bounds = array<i64: 1, 1, 256>}, {transform_indices = @transform_6, window_bounds = array<i64: 4, 64, 128>}, {pipeline_mode = #tpu.pipeline_mode<synchronous>, transform_indices = @transform_7, window_bounds = array<i64: 4, 1, 128>}, {transform_indices = @transform_8, window_bounds = array<i64: 4, 8, 128>}]} {
    %c0 = arith.constant 0 : index
    %c0_0 = arith.constant 0 : index
    %0 = vector.load %arg3[%c0, %c0_0] : memref<8x64xf32, #tpu.memory_space<vmem>>, vector<8x64xf32>
    %cst = arith.constant dense<0.000000e+00> : vector<8xf32>
    %1 = vector.multi_reduction <add>, %0, %cst [1] : vector<8x64xf32> to vector<8xf32>
    %2 = vector.shape_cast %1 : vector<8xf32> to vector<8x1xf32>
    %cst_1 = arith.constant 6.400000e+01 : f32
    %3 = vector.broadcast %cst_1 : f32 to vector<8x1xf32>
    %4 = arith.divf %2, %3 : vector<8x1xf32>
    %5 = vector.broadcast %4 : vector<8x1xf32> to vector<8x64xf32>
    %6 = arith.subf %0, %5 : vector<8x64xf32>
    %7 = arith.mulf %6, %6 : vector<8x64xf32>
    %cst_2 = arith.constant dense<0.000000e+00> : vector<8xf32>
    %8 = vector.multi_reduction <add>, %7, %cst_2 [1] : vector<8x64xf32> to vector<8xf32>
    %9 = vector.shape_cast %8 : vector<8xf32> to vector<8x1xf32>
    %cst_3 = arith.constant 6.400000e+01 : f32
    %10 = vector.broadcast %cst_3 : f32 to vector<8x1xf32>
    %11 = arith.divf %9, %10 : vector<8x1xf32>
    %cst_4 = arith.constant 9.99999974E-6 : f32
    %12 = vector.broadcast %cst_4 : f32 to vector<8x1xf32>
    %13 = arith.addf %11, %12 : vector<8x1xf32>
    %14 = math.rsqrt %13 : vector<8x1xf32>
    %15 = vector.broadcast %14 : vector<8x1xf32> to vector<8x64xf32>
    %16 = arith.mulf %6, %15 : vector<8x64xf32>
    %c0_5 = arith.constant 0 : index
    %c0_6 = arith.constant 0 : index
    %17 = vector.load %arg4[%c0_5, %c0_6] : memref<1x64xf32, #tpu.memory_space<vmem>>, vector<1x64xf32>
    %18 = vector.broadcast %17 : vector<1x64xf32> to vector<8x64xf32>
    %19 = arith.mulf %16, %18 : vector<8x64xf32>
    %c0_7 = arith.constant 0 : index
    %c0_8 = arith.constant 0 : index
    %20 = vector.load %arg5[%c0_7, %c0_8] : memref<1x64xf32, #tpu.memory_space<vmem>>, vector<1x64xf32>
    %21 = vector.broadcast %20 : vector<1x64xf32> to vector<8x64xf32>
    %22 = arith.addf %19, %21 : vector<8x64xf32>
    %23 = arith.truncf %22 : vector<8x64xf32> to vector<8x64xbf16>
    %c0_9 = arith.constant 0 : index
    %c0_10 = arith.constant 0 : index
    %c0_11 = arith.constant 0 : index
    %24 = vector.load %arg6[%c0_9, %c0_10, %c0_11] : memref<1x64x256xbf16, #tpu.memory_space<vmem>>, vector<1x64x256xbf16>
    %25 = vector.shape_cast %24 : vector<1x64x256xbf16> to vector<64x256xbf16>
    %cst_12 = arith.constant dense<0.000000e+00> : vector<8x256xf32>
    %26 = tpu.matmul %23, %25, %cst_12 {dimension_numbers = #tpu.dot_dimension_numbers<[1], [0], [0], [1], [0, 0, 1, 1], [], []>} : vector<8x64xbf16>, vector<64x256xbf16>, vector<8x256xf32> -> vector<8x256xf32>
    %27 = arith.index_cast %arg0 : i32 to index
    %c0_13 = arith.constant 0 : index
    %c0_14 = arith.constant 0 : index
    %28 = vector.load %arg7[%27, %c0_13, %c0_14] : memref<1x1x256xf32, #tpu.memory_space<vmem>>, vector<1x1x256xf32>
    %29 = vector.shape_cast %28 : vector<1x1x256xf32> to vector<1x256xf32>
    %30 = vector.broadcast %29 : vector<1x256xf32> to vector<8x256xf32>
    %31 = arith.addf %26, %30 : vector<8x256xf32>
    %cst_15 = arith.constant 0.000000e+00 : f32
    %32 = vector.broadcast %cst_15 : f32 to vector<8x256xf32>
    %33 = arith.maximumf %31, %32 : vector<8x256xf32>
    %34 = arith.truncf %33 : vector<8x256xf32> to vector<8x256xbf16>
    %c4_i32 = arith.constant 4 : i32
    %35 = arith.muli %arg0, %c4_i32 : i32
    %c0_i32 = arith.constant 0 : i32
    %36 = arith.addi %35, %c0_i32 : i32
    %37 = vector.extract_strided_slice %34 {offsets = [0, 0], sizes = [8, 64], strides = [1, 1]} : vector<8x256xbf16> to vector<8x64xbf16>
    %c0_16 = arith.constant 0 : index
    %c0_17 = arith.constant 0 : index
    %c0_18 = arith.constant 0 : index
    %38 = vector.load %arg8[%c0_16, %c0_17, %c0_18] : memref<4x64x128xbf16, #tpu.memory_space<vmem>>, vector<1x64x128xbf16>
    %39 = vector.shape_cast %38 : vector<1x64x128xbf16> to vector<64x128xbf16>
    %cst_19 = arith.constant dense<0.000000e+00> : vector<8x128xf32>
    %40 = tpu.matmul %37, %39, %cst_19 {dimension_numbers = #tpu.dot_dimension_numbers<[1], [0], [0], [1], [0, 0, 1, 1], [], []>} : vector<8x64xbf16>, vector<64x128xbf16>, vector<8x128xf32> -> vector<8x128xf32>
    %41 = arith.index_cast %36 : i32 to index
    %c0_20 = arith.constant 0 : index
    %c0_21 = arith.constant 0 : index
    %42 = vector.load %arg9[%41, %c0_20, %c0_21] : memref<4x1x128xf32, #tpu.memory_space<vmem>>, vector<1x1x128xf32>
    %43 = vector.shape_cast %42 : vector<1x1x128xf32> to vector<1x128xf32>
    %44 = vector.broadcast %43 : vector<1x128xf32> to vector<8x128xf32>
    %45 = arith.addf %40, %44 : vector<8x128xf32>
    %c0_22 = arith.constant 0 : index
    %c0_23 = arith.constant 0 : index
    %46 = vector.load %arg2[%c0_22, %c0_23] : memref<8x1xi32, #tpu.memory_space<vmem>>, vector<8x1xi32>
    %47 = arith.index_cast %36 : i32 to index
    %48 = memref.load %arg1[%47] : memref<4xi32, #tpu.memory_space<smem>>
    %49 = vector.broadcast %48 : i32 to vector<8x1xi32>
    %50 = arith.cmpi eq, %46, %49 : vector<8x1xi32>
    %cst_24 = arith.constant 0xFF800000 : f32
    %51 = vector.shape_cast %50 : vector<8x1xi1> to vector<8x1xi1>
    %52 = vector.broadcast %51 : vector<8x1xi1> to vector<8x128xi1>
    %53 = vector.broadcast %cst_24 : f32 to vector<8x128xf32>
    %54 = arith.select %52, %45, %53 : vector<8x128xi1>, vector<8x128xf32>
    %c0_25 = arith.constant 0 : index
    %c0_26 = arith.constant 0 : index
    %c0_27 = arith.constant 0 : index
    %55 = vector.load %arg10[%c0_25, %c0_26, %c0_27] : memref<4x8x128xf32, #tpu.memory_space<vmem>>, vector<1x8x128xf32>
    %56 = vector.shape_cast %55 : vector<1x8x128xf32> to vector<8x128xf32>
    %57 = vector.shape_cast %54 : vector<8x128xf32> to vector<1x8x128xf32>
    tpu.vector_store %arg10[%c0_25, %c0_26, %c0_27], %57 {strides = array<i32>} : memref<4x8x128xf32, #tpu.memory_space<vmem>>, vector<1x8x128xf32>,
    %c4_i32_28 = arith.constant 4 : i32
    %58 = arith.muli %arg0, %c4_i32_28 : i32
    %c1_i32 = arith.constant 1 : i32
    %59 = arith.addi %58, %c1_i32 : i32
    %60 = vector.extract_strided_slice %34 {offsets = [0, 64], sizes = [8, 64], strides = [1, 1]} : vector<8x256xbf16> to vector<8x64xbf16>
    %c1 = arith.constant 1 : index
    %c0_29 = arith.constant 0 : index
    %c0_30 = arith.constant 0 : index
    %61 = vector.load %arg8[%c1, %c0_29, %c0_30] : memref<4x64x128xbf16, #tpu.memory_space<vmem>>, vector<1x64x128xbf16>
    %62 = vector.shape_cast %61 : vector<1x64x128xbf16> to vector<64x128xbf16>
    %cst_31 = arith.constant dense<0.000000e+00> : vector<8x128xf32>
    %63 = tpu.matmul %60, %62, %cst_31 {dimension_numbers = #tpu.dot_dimension_numbers<[1], [0], [0], [1], [0, 0, 1, 1], [], []>} : vector<8x64xbf16>, vector<64x128xbf16>, vector<8x128xf32> -> vector<8x128xf32>
    %64 = arith.index_cast %59 : i32 to index
    %c0_32 = arith.constant 0 : index
    %c0_33 = arith.constant 0 : index
    %65 = vector.load %arg9[%64, %c0_32, %c0_33] : memref<4x1x128xf32, #tpu.memory_space<vmem>>, vector<1x1x128xf32>
    %66 = vector.shape_cast %65 : vector<1x1x128xf32> to vector<1x128xf32>
    %67 = vector.broadcast %66 : vector<1x128xf32> to vector<8x128xf32>
    %68 = arith.addf %63, %67 : vector<8x128xf32>
    %c0_34 = arith.constant 0 : index
    %c0_35 = arith.constant 0 : index
    %69 = vector.load %arg2[%c0_34, %c0_35] : memref<8x1xi32, #tpu.memory_space<vmem>>, vector<8x1xi32>
    %70 = arith.index_cast %59 : i32 to index
    %71 = memref.load %arg1[%70] : memref<4xi32, #tpu.memory_space<smem>>
    %72 = vector.broadcast %71 : i32 to vector<8x1xi32>
    %73 = arith.cmpi eq, %69, %72 : vector<8x1xi32>
    %cst_36 = arith.constant 0xFF800000 : f32
    %74 = vector.shape_cast %73 : vector<8x1xi1> to vector<8x1xi1>
    %75 = vector.broadcast %74 : vector<8x1xi1> to vector<8x128xi1>
    %76 = vector.broadcast %cst_36 : f32 to vector<8x128xf32>
    %77 = arith.select %75, %68, %76 : vector<8x128xi1>, vector<8x128xf32>
    %c1_37 = arith.constant 1 : index
    %c0_38 = arith.constant 0 : index
    %c0_39 = arith.constant 0 : index
    %78 = vector.load %arg10[%c1_37, %c0_38, %c0_39] : memref<4x8x128xf32, #tpu.memory_space<vmem>>, vector<1x8x128xf32>
    %79 = vector.shape_cast %78 : vector<1x8x128xf32> to vector<8x128xf32>
    %80 = vector.shape_cast %77 : vector<8x128xf32> to vector<1x8x128xf32>
    tpu.vector_store %arg10[%c1_37, %c0_38, %c0_39], %80 {strides = array<i32>} : memref<4x8x128xf32, #tpu.memory_space<vmem>>, vector<1x8x128xf32>,
    %c4_i32_40 = arith.constant 4 : i32
    %81 = arith.muli %arg0, %c4_i32_40 : i32
    %c2_i32 = arith.constant 2 : i32
    %82 = arith.addi %81, %c2_i32 : i32
    %83 = vector.extract_strided_slice %34 {offsets = [0, 128], sizes = [8, 64], strides = [1, 1]} : vector<8x256xbf16> to vector<8x64xbf16>
    %c2 = arith.constant 2 : index
    %c0_41 = arith.constant 0 : index
    %c0_42 = arith.constant 0 : index
    %84 = vector.load %arg8[%c2, %c0_41, %c0_42] : memref<4x64x128xbf16, #tpu.memory_space<vmem>>, vector<1x64x128xbf16>
    %85 = vector.shape_cast %84 : vector<1x64x128xbf16> to vector<64x128xbf16>
    %cst_43 = arith.constant dense<0.000000e+00> : vector<8x128xf32>
    %86 = tpu.matmul %83, %85, %cst_43 {dimension_numbers = #tpu.dot_dimension_numbers<[1], [0], [0], [1], [0, 0, 1, 1], [], []>} : vector<8x64xbf16>, vector<64x128xbf16>, vector<8x128xf32> -> vector<8x128xf32>
    %87 = arith.index_cast %82 : i32 to index
    %c0_44 = arith.constant 0 : index
    %c0_45 = arith.constant 0 : index
    %88 = vector.load %arg9[%87, %c0_44, %c0_45] : memref<4x1x128xf32, #tpu.memory_space<vmem>>, vector<1x1x128xf32>
    %89 = vector.shape_cast %88 : vector<1x1x128xf32> to vector<1x128xf32>
    %90 = vector.broadcast %89 : vector<1x128xf32> to vector<8x128xf32>
    %91 = arith.addf %86, %90 : vector<8x128xf32>
    %c0_46 = arith.constant 0 : index
    %c0_47 = arith.constant 0 : index
    %92 = vector.load %arg2[%c0_46, %c0_47] : memref<8x1xi32, #tpu.memory_space<vmem>>, vector<8x1xi32>
    %93 = arith.index_cast %82 : i32 to index
    %94 = memref.load %arg1[%93] : memref<4xi32, #tpu.memory_space<smem>>
    %95 = vector.broadcast %94 : i32 to vector<8x1xi32>
    %96 = arith.cmpi eq, %92, %95 : vector<8x1xi32>
    %cst_48 = arith.constant 0xFF800000 : f32
    %97 = vector.shape_cast %96 : vector<8x1xi1> to vector<8x1xi1>
    %98 = vector.broadcast %97 : vector<8x1xi1> to vector<8x128xi1>
    %99 = vector.broadcast %cst_48 : f32 to vector<8x128xf32>
    %100 = arith.select %98, %91, %99 : vector<8x128xi1>, vector<8x128xf32>
    %c2_49 = arith.constant 2 : index
    %c0_50 = arith.constant 0 : index
    %c0_51 = arith.constant 0 : index
    %101 = vector.load %arg10[%c2_49, %c0_50, %c0_51] : memref<4x8x128xf32, #tpu.memory_space<vmem>>, vector<1x8x128xf32>
    %102 = vector.shape_cast %101 : vector<1x8x128xf32> to vector<8x128xf32>
    %103 = vector.shape_cast %100 : vector<8x128xf32> to vector<1x8x128xf32>
    tpu.vector_store %arg10[%c2_49, %c0_50, %c0_51], %103 {strides = array<i32>} : memref<4x8x128xf32, #tpu.memory_space<vmem>>, vector<1x8x128xf32>,
    %c4_i32_52 = arith.constant 4 : i32
    %104 = arith.muli %arg0, %c4_i32_52 : i32
    %c3_i32 = arith.constant 3 : i32
    %105 = arith.addi %104, %c3_i32 : i32
    %106 = vector.extract_strided_slice %34 {offsets = [0, 192], sizes = [8, 64], strides = [1, 1]} : vector<8x256xbf16> to vector<8x64xbf16>
    %c3 = arith.constant 3 : index
    %c0_53 = arith.constant 0 : index
    %c0_54 = arith.constant 0 : index
    %107 = vector.load %arg8[%c3, %c0_53, %c0_54] : memref<4x64x128xbf16, #tpu.memory_space<vmem>>, vector<1x64x128xbf16>
    %108 = vector.shape_cast %107 : vector<1x64x128xbf16> to vector<64x128xbf16>
    %cst_55 = arith.constant dense<0.000000e+00> : vector<8x128xf32>
    %109 = tpu.matmul %106, %108, %cst_55 {dimension_numbers = #tpu.dot_dimension_numbers<[1], [0], [0], [1], [0, 0, 1, 1], [], []>} : vector<8x64xbf16>, vector<64x128xbf16>, vector<8x128xf32> -> vector<8x128xf32>
    %110 = arith.index_cast %105 : i32 to index
    %c0_56 = arith.constant 0 : index
    %c0_57 = arith.constant 0 : index
    %111 = vector.load %arg9[%110, %c0_56, %c0_57] : memref<4x1x128xf32, #tpu.memory_space<vmem>>, vector<1x1x128xf32>
    %112 = vector.shape_cast %111 : vector<1x1x128xf32> to vector<1x128xf32>
    %113 = vector.broadcast %112 : vector<1x128xf32> to vector<8x128xf32>
    %114 = arith.addf %109, %113 : vector<8x128xf32>
    %c0_58 = arith.constant 0 : index
    %c0_59 = arith.constant 0 : index
    %115 = vector.load %arg2[%c0_58, %c0_59] : memref<8x1xi32, #tpu.memory_space<vmem>>, vector<8x1xi32>
    %116 = arith.index_cast %105 : i32 to index
    %117 = memref.load %arg1[%116] : memref<4xi32, #tpu.memory_space<smem>>
    %118 = vector.broadcast %117 : i32 to vector<8x1xi32>
    %119 = arith.cmpi eq, %115, %118 : vector<8x1xi32>
    %cst_60 = arith.constant 0xFF800000 : f32
    %120 = vector.shape_cast %119 : vector<8x1xi1> to vector<8x1xi1>
    %121 = vector.broadcast %120 : vector<8x1xi1> to vector<8x128xi1>
    %122 = vector.broadcast %cst_60 : f32 to vector<8x128xf32>
    %123 = arith.select %121, %114, %122 : vector<8x128xi1>, vector<8x128xf32>
    %c3_61 = arith.constant 3 : index
    %c0_62 = arith.constant 0 : index
    %c0_63 = arith.constant 0 : index
    %124 = vector.load %arg10[%c3_61, %c0_62, %c0_63] : memref<4x8x128xf32, #tpu.memory_space<vmem>>, vector<1x8x128xf32>
    %125 = vector.shape_cast %124 : vector<1x8x128xf32> to vector<8x128xf32>
    %126 = vector.shape_cast %123 : vector<8x128xf32> to vector<1x8x128xf32>
    tpu.vector_store %arg10[%c3_61, %c0_62, %c0_63], %126 {strides = array<i32>} : memref<4x8x128xf32, #tpu.memory_space<vmem>>, vector<1x8x128xf32>,
    return
  }
  func.func @transform_0(%arg0: i32, %arg1: memref<4xi32, #tpu.memory_space<smem>>) -> (i32, i32) {
    %c0_i32 = arith.constant 0 : i32
    %c0_i32_0 = arith.constant 0 : i32
    %c0_i32_1 = arith.constant 0 : i32
    return %c0_i32, %c0_i32_0 : i32, i32
  }
  func.func @transform_1(%arg0: i32, %arg1: memref<4xi32, #tpu.memory_space<smem>>) -> (i32, i32) {
    %c0_i32 = arith.constant 0 : i32
    %c0_i32_0 = arith.constant 0 : i32
    %c0_i32_1 = arith.constant 0 : i32
    return %c0_i32, %c0_i32_0 : i32, i32
  }
  func.func @transform_2(%arg0: i32, %arg1: memref<4xi32, #tpu.memory_space<smem>>) -> (i32, i32) {
    %c0_i32 = arith.constant 0 : i32
    %c0_i32_0 = arith.constant 0 : i32
    %c0_i32_1 = arith.constant 0 : i32
    return %c0_i32, %c0_i32_0 : i32, i32
  }
  func.func @transform_3(%arg0: i32, %arg1: memref<4xi32, #tpu.memory_space<smem>>) -> (i32, i32) {
    %c0_i32 = arith.constant 0 : i32
    %c0_i32_0 = arith.constant 0 : i32
    %c0_i32_1 = arith.constant 0 : i32
    return %c0_i32, %c0_i32_0 : i32, i32
  }
  func.func @transform_4(%arg0: i32, %arg1: memref<4xi32, #tpu.memory_space<smem>>) -> (i32, i32, i32) {
    %c0_i32 = arith.constant 0 : i32
    %c0_i32_0 = arith.constant 0 : i32
    %c0_i32_1 = arith.constant 0 : i32
    return %arg0, %c0_i32, %c0_i32_0 : i32, i32, i32
  }
  func.func @transform_5(%arg0: i32, %arg1: memref<4xi32, #tpu.memory_space<smem>>) -> (i32, i32, i32) {
    %c0_i32 = arith.constant 0 : i32
    %c0_i32_0 = arith.constant 0 : i32
    %c0_i32_1 = arith.constant 0 : i32
    %c0_i32_2 = arith.constant 0 : i32
    return %c0_i32, %c0_i32_0, %c0_i32_1 : i32, i32, i32
  }
  func.func @transform_6(%arg0: i32, %arg1: memref<4xi32, #tpu.memory_space<smem>>) -> (i32, i32, i32) {
    %c0_i32 = arith.constant 0 : i32
    %c0_i32_0 = arith.constant 0 : i32
    %c0_i32_1 = arith.constant 0 : i32
    return %arg0, %c0_i32, %c0_i32_0 : i32, i32, i32
  }
  func.func @transform_7(%arg0: i32, %arg1: memref<4xi32, #tpu.memory_space<smem>>) -> (i32, i32, i32) {
    %c0_i32 = arith.constant 0 : i32
    %c0_i32_0 = arith.constant 0 : i32
    %c0_i32_1 = arith.constant 0 : i32
    %c0_i32_2 = arith.constant 0 : i32
    return %c0_i32, %c0_i32_0, %c0_i32_1 : i32, i32, i32
  }
  func.func @transform_8(%arg0: i32, %arg1: memref<4xi32, #tpu.memory_space<smem>>) -> (i32, i32, i32) {
    %c0_i32 = arith.constant 0 : i32
    %c0_i32_0 = arith.constant 0 : i32
    %c0_i32_1 = arith.constant 0 : i32
    return %arg0, %c0_i32, %c0_i32_0 : i32, i32, i32
  }
}

</mosaic_0001>

<llo_original>
// kernel: fused_predict.1
$region0: #{fused_predict.1}
  #allocation0 [shape = 'u32[]', space=smem, size = 0x4, offset = 0x4, fixed_abs, tag = 'smem constant byte address 0x4 - core index']
  #allocation1 [shape = 'u32[144,128]{1,0:T(1,128)}', space=vmem, size = 0x12000, scoped, tag = 'internal scratch']
  #allocation2 [shape = 's32[1]{0}', space=sflag, size = 0x4, scoped, tag = 'scoped memory for fused_predict.1']
  #allocation3 [shape = 'u8[512]{0}', space=smem, size = 0x200, scoped, tag = 'prefetched SMEM operand 0']
  %s0 = inlined_call_operand.vmem [shape: s32[4], index: 0, kind: input, shape index: {}]
  %s1 = inlined_call_operand.vmem [shape: s32[8,1], index: 1, kind: input, shape index: {}]
  %s2 = inlined_call_operand.vmem [shape: f32[8,64], index: 2, kind: input, shape index: {}]
  %s3 = inlined_call_operand.vmem [shape: f32[1,64], index: 3, kind: input, shape index: {}]
  %s4 = inlined_call_operand.vmem [shape: f32[1,64], index: 4, kind: input, shape index: {}]
  %s5 = inlined_call_operand.hbm [shape: bf16[1,64,256], index: 5, kind: input, shape index: {}]
  %s6 = inlined_call_operand.vmem [shape: f32[1,1,256], index: 6, kind: input, shape index: {}]
  %s7 = inlined_call_operand.hbm [shape: bf16[4,64,128], index: 7, kind: input, shape index: {}]
  %s8 = inlined_call_operand.vmem [shape: f32[4,1,128], index: 8, kind: input, shape index: {}]
  %s9 = inlined_call_operand.hbm [shape: f32[4,8,128], index: 9, kind: output, shape index: {}]
  %s10 = sld [smem:[#allocation0]]
  $region50: #{fused_predict.1} parent=0
    _
  %s12 = ssub.s32 1, %s10
  %s13 = scalar_select 0, %s12, %s10
  %s14 = sshll.u32 %s0, 4
  %s15 = int_to_ptr.vmem [resolvable:$true] %s14
  %17 = dma.vmem_to_smem %s15, 16, [#allocation3], [#allocation2]
  %18 = dma.done [#allocation2], 16
  %19 = sfence
  $region1: #{fused_predict.1} parent=0
    #allocation4 [shape = 'u8[32768]{0}', space=vmem, size = 0x8000, scoped, tag = 'input window, operand 5, single buffered']
    #allocation5 [shape = 's32[1]{0}', space=sflag, size = 0x4, scoped, tag = 'scoped memory for fused_predict.1']
    #allocation6 [shape = 's32[1]{0}', space=sflag, size = 0x4, scoped, tag = 'scoped memory for fused_predict.1']
    #allocation7 [shape = 'u8[65536]{0}', space=vmem, size = 0x10000, scoped, tag = 'input window, operand 7, single buffered']
    #allocation8 [shape = 's32[1]{0}', space=sflag, size = 0x4, scoped, tag = 'scoped memory for fused_predict.1']
    #allocation9 [shape = 'u8[16384]{0}', space=vmem, size = 0x4000, scoped, tag = 'output window, operand 0, single buffered']
    %20 = vsyncpa [#allocation5], 0
    %21 = vsyncpa [#allocation8], 0
    %22 = vsyncpa [#allocation6], 0
    // Predicated region
    $region2: #{fused_predict.1} parent=1 // pred_check
      _
    $region3: #{fused_predict.1} parent=1 // pred_check_branch
      %24 = sbr.rel (0) target = $region5
    $region4: #{fused_predict.1} parent=1 // pred_region
      _
    $region5: #{fused_predict.1} parent=1 // pred_fallthru
      _
    // Predicated region
    $region6: #{fused_predict.1} parent=1 // pred_check
      _
    $region7: #{fused_predict.1} parent=1 // pred_check_branch
      %26 = sbr.rel (0) target = $region9
    $region8: #{fused_predict.1} parent=1 // pred_region
      _
    $region9: #{fused_predict.1} parent=1 // pred_fallthru
      _
    // Predicated region
    $region10: #{fused_predict.1} parent=1 // pred_check
      _
    $region11: #{fused_predict.1} parent=1 // pred_check_branch
      %28 = sbr.rel (0) target = $region13
    $region12: #{fused_predict.1} parent=1 // pred_region
      _
    $region13: #{fused_predict.1} parent=1 // pred_fallthru
      _
    // Predicated region
    $region14: #{fused_predict.1} parent=1 // pred_check
      _
    $region15: #{fused_predict.1} parent=1 // pred_check_branch
      %30 = sbr.rel (0) target = $region17
    $region16: #{fused_predict.1} parent=1 // pred_region
      _
    $region17: #{fused_predict.1} parent=1 // pred_fallthru
      _
    // Predicated region
    $region18: #{fused_predict.1} parent=1 // pred_check
      _
    $region19: #{fused_predict.1} parent=1 // pred_check_branch
      %32 = sbr.rel (0) target = $region21
    $region20: #{fused_predict.1} parent=1 // pred_region
      %s34 = ssub.s32 1024, 1024
      %35 = vsyncadd [#allocation5], %s34
      %s36 = sshll.u32 [#allocation4], 4
      %s37 = int_to_ptr.vmem [resolvable:$true] %s36
      %42 = dma.hbm_to_vmem [thread:$0]  %s5, 1024, %s37, [#allocation5], 128, 128, 8
    $region21: #{fused_predict.1} parent=1 // pred_fallthru
      _
    // Predicated region
    $region22: #{fused_predict.1} parent=1 // pred_check
      _
    $region23: #{fused_predict.1} parent=1 // pred_check_branch
      %44 = sbr.rel (0) target = $region25
    $region24: #{fused_predict.1} parent=1 // pred_region
      _
    $region25: #{fused_predict.1} parent=1 // pred_fallthru
      _
    // Predicated region
    $region26: #{fused_predict.1} parent=1 // pred_check
      _
    $region27: #{fused_predict.1} parent=1 // pred_check_branch
      %46 = sbr.rel (0) target = $region29
    $region28: #{fused_predict.1} parent=1 // pred_region
      %s48 = ssub.s32 2048, 2048
      %49 = vsyncadd [#allocation8], %s48
      %s50 = sshll.u32 [#allocation7], 4
      %s51 = int_to_ptr.vmem [resolvable:$true] %s50
      %56 = dma.hbm_to_vmem [thread:$0]  %s7, 2048, %s51, [#allocation8], 64, 64, 4
    $region29: #{fused_predict.1} parent=1 // pred_fallthru
      _
    // Predicated region
    $region30: #{fused_predict.1} parent=1 // pred_check
      _
    $region31: #{fused_predict.1} parent=1 // pred_check_branch
      %58 = sbr.rel (0) target = $region33
    $region32: #{fused_predict.1} parent=1 // pred_region
      _
    $region33: #{fused_predict.1} parent=1 // pred_fallthru
      _
    // Predicated region
    $region34: #{fused_predict.1} parent=1 // pred_check
      _
    $region35: #{fused_predict.1} parent=1 // pred_check_branch
      %60 = sbr.rel (0) target = $region37
    $region36: #{fused_predict.1} parent=1 // pred_region
      %61 = dma.done [#allocation5], 1024
    $region37: #{fused_predict.1} parent=1 // pred_fallthru
      _
    // Predicated region
    $region38: #{fused_predict.1} parent=1 // pred_check
      _
    $region39: #{fused_predict.1} parent=1 // pred_check_branch
      %63 = sbr.rel (0) target = $region41
    $region40: #{fused_predict.1} parent=1 // pred_region
      %64 = dma.done [#allocation8], 2048
    $region41: #{fused_predict.1} parent=1 // pred_fallthru
      _
    %v66 = vld [vmem:[%s2] sm:$0xff]
    %vm67 = vcmask 523264
    %v68 = vsel %vm67, %v66, 0.0
    %69 = vadd.xlane.f32.xlu0 %v68
    %v70 = vpop.xlane.xlu0 %69
    %v71 = vrcp.pop 64.0
    %v72 = vmul.f32 %v70, %v71
    %v73 = vsub.f32 %v66, %v72
    %v74 = vmul.f32 %v73, %v73
    %v75 = vsel %vm67, %v74, 0.0
    %76 = vadd.xlane.f32.xlu0 %v75
    %v77 = vpop.xlane.xlu0 %76
    %v78 = vmul.f32 %v77, %v71
    %v79 = vadd.f32 %v78, 1e-05
    %v80 = vrsqrt.pop %v79
    %v81 = vmul.f32 %v73, %v80
    %v82 = vld [vmem:[%s3] sm:$0x1]
    %v84 = vlaneseq
    %v85 = vshrl.u32 %v84, 7
    %v86 = vsub.s32 0, %v85
    %v87 = vrot.slane %v82, %v86
    %v89 = vmul.f32 %v81, %v87
    %v90 = vld [vmem:[%s4] sm:$0x1]
    %v92 = vlaneseq
    %v93 = vshrl.u32 %v92, 7
    %v94 = vsub.s32 0, %v93
    %v95 = vrot.slane %v90, %v94
    %v97 = vadd.f32 %v89, %v95
    %v98 = vpack.c.bf16 %v97, %v97
    %v99 = vld [vmem:[#allocation4] sm:$0xff]
    %v100 = vld [vmem:[#allocation4 + $0x8] sm:$0xff]
    %v101 = vld [vmem:[#allocation4 + $0x10] sm:$0xff]
    %v102 = vld [vmem:[#allocation4 + $0x18] sm:$0xff]
    %v103 = vld [vmem:[#allocation4 + $0x20] sm:$0xff]
    %v104 = vld [vmem:[#allocation4 + $0x28] sm:$0xff]
    %v105 = vld [vmem:[#allocation4 + $0x30] sm:$0xff]
    %v106 = vld [vmem:[#allocation4 + $0x38] sm:$0xff]
    %s107 = smul.u32 0, 2
    %s108 = scalar_lea.vmem %s6, %s107
    %v109 = vld [vmem:[%s108] sm:$0x3]
    %v111 = vlaneseq
    %v112 = vshrl.u32 %v111, 7
    %v113 = vsub.s32 0, %v112
    %v114 = vrot.slane %v109, %v113
    %v115 = vlaneseq
    %v116 = vshrl.u32 %v115, 7
    %v117 = vsub.s32 1, %v116
    %v118 = vrot.slane %v109, %v117
    %v129 = vunpack.c.l.b16 %v99
    %v130 = vunpack.c.h.b16 %v99
    %v131 = vunpack.c.l.b16 %v100
    %v132 = vunpack.c.h.b16 %v100
    %v133 = vunpack.c.l.b16 %v101
    %v134 = vunpack.c.h.b16 %v101
    %v135 = vunpack.c.l.b16 %v102
    %v136 = vunpack.c.h.b16 %v102
    %v137 = vunpack.c.l.b16 %v103
    %v138 = vunpack.c.h.b16 %v103
    %v139 = vunpack.c.l.b16 %v104
    %v140 = vunpack.c.h.b16 %v104
    %v141 = vunpack.c.l.b16 %v105
    %v142 = vunpack.c.h.b16 %v105
    %v143 = vunpack.c.l.b16 %v106
    %v144 = vunpack.c.h.b16 %v106
    %v145 = vpack.c.b16 %v131, %v129
    %v146 = vpack.c.b16 %v132, %v130
    %v147 = vpack.c.b16 %v135, %v133
    %v148 = vpack.c.b16 %v136, %v134
    %v149 = vpack.c.b16 %v139, %v137
    %v150 = vpack.c.b16 %v140, %v138
    %v151 = vpack.c.b16 %v143, %v141
    %v152 = vpack.c.b16 %v144, %v142
    %v162 = vsel %vm67, %v98, 0
    %164 = vmatprep.subr.bf16.mxu0 %v146
    %165 = vmatpush1.bf16.msra.mxu0 %v145
    %166 = vmatprep.subr.bf16.mxu0 %v148
    %167 = vmatpush1.bf16.msra.mxu0 %v147
    %168 = vmatprep.subr.bf16.mxu0 %v150
    %169 = vmatpush1.bf16.msra.mxu0 %v149
    %170 = vmatprep.subr.bf16.mxu0 %v152
    %171 = vmatpush1.bf16.msra.mxu0 %v151
    %172 = vmatprep.subr.bf16.mxu0 0
    %173 = vmatpush1.bf16.msra.mxu0 0
    %174 = vmatprep.subr.bf16.mxu0 0
    %175 = vmatpush1.bf16.msra.mxu0 0
    %176 = vmatprep.subr.bf16.mxu0 0
    %177 = vmatpush1.bf16.msra.mxu0 0
    %178 = vmatprep.subr.bf16.mxu0 0
    %179 = vmatpush1.bf16.msra.mxu0 0
    %180 = vmatprep.subr.bf16.mxu0 0
    %181 = vmatpush1.bf16.msra.mxu0 0
    %182 = vmatprep.subr.bf16.mxu0 0
    %183 = vmatpush1.bf16.msra.mxu0 0
    %184 = vmatprep.subr.bf16.mxu0 0
    %185 = vmatpush1.bf16.msra.mxu0 0
    %186 = vmatprep.subr.bf16.mxu0 0
    %187 = vmatpush1.bf16.msra.mxu0 0
    %188 = vmatprep.subr.bf16.mxu0 0
    %189 = vmatpush1.bf16.msra.mxu0 0
    %190 = vmatprep.subr.bf16.mxu0 0
    %191 = vmatpush1.bf16.msra.mxu0 0
    %192 = vmatprep.subr.bf16.mxu0 0
    %193 = vmatpush1.bf16.msra.mxu0 0
    %194 = vmatprep.subr.bf16.mxu0 0
    %195 = vmatpush1.bf16.msra.mxu0 0
    %196 = vmatprep.mubr.bf16.mxu0 0
    %197 = vmatmul.mubr.bf16.gmra.mrb[0].mxu0 %v162
    %v198 = vpop.f32.mrb[0].mxu0
    %v199 = vadd.f32 %v114, %v198
    %v200 = vpop.f32.mrb[0].mxu0
    %v201 = vadd.f32 %v118, %v200
    %v202 = vpop.f32.mrb[0].mxu0
    %v203 = vpop.f32.mrb[0].mxu0
    %204 = vdwg.mxu0
    %v205 = vmax.f32 %v199, 0.0
    %v206 = vmax.f32 %v201, 0.0
    %v207 = vpack.c.bf16 %v205, %v205
    %v208 = vpack.c.bf16 %v206, %v206
    %s209 = smul.u32 0, 4
    %v210 = vld [vmem:[#allocation7] sm:$0xf]
    %v211 = vld [vmem:[#allocation7 + $0x4] sm:$0xf]
    %v212 = vld [vmem:[#allocation7 + $0x8] sm:$0xf]
    %v213 = vld [vmem:[#allocation7 + $0xc] sm:$0xf]
    %v214 = vld [vmem:[#allocation7 + $0x10] sm:$0xf]
    %v215 = vld [vmem:[#allocation7 + $0x14] sm:$0xf]
    %v216 = vld [vmem:[#allocation7 + $0x18] sm:$0xf]
    %v217 = vld [vmem:[#allocation7 + $0x1c] sm:$0xf]
    %s218 = scalar_lea.vmem %s8, %s209
    %v219 = vld [vmem:[%s218] sm:$0x1]
    %v221 = vlaneseq
    %v222 = vshrl.u32 %v221, 7
    %v223 = vsub.s32 0, %v222
    %v224 = vrot.slane %v219, %v223
    %v234 = vunpack.c.l.b16 %v210
    %v235 = vunpack.c.l.b16 %v211
    %v236 = vunpack.c.l.b16 %v212
    %v237 = vunpack.c.l.b16 %v213
    %v238 = vunpack.c.l.b16 %v214
    %v239 = vunpack.c.l.b16 %v215
    %v240 = vunpack.c.l.b16 %v216
    %v241 = vunpack.c.l.b16 %v217
    %v242 = vpack.c.b16 %v235, %v234
    %v243 = vpack.c.b16 %v237, %v236
    %v244 = vpack.c.b16 %v239, %v238
    %v245 = vpack.c.b16 %v241, %v240
    %v251 = vsel %vm67, %v207, 0
    %253 = vmatprep.subr.bf16.mxu0 0
    %254 = vmatpush1.bf16.msra.mxu0 %v242
    %255 = vmatprep.subr.bf16.mxu0 0
    %256 = vmatpush1.bf16.msra.mxu0 %v243
    %257 = vmatprep.subr.bf16.mxu0 0
    %258 = vmatpush1.bf16.msra.mxu0 %v244
    %259 = vmatprep.subr.bf16.mxu0 0
    %260 = vmatpush1.bf16.msra.mxu0 %v245
    %261 = vmatprep.subr.bf16.mxu0 0
    %262 = vmatpush1.bf16.msra.mxu0 0
    %263 = vmatprep.subr.bf16.mxu0 0
    %264 = vmatpush1.bf16.msra.mxu0 0
    %265 = vmatprep.subr.bf16.mxu0 0
    %266 = vmatpush1.bf16.msra.mxu0 0
    %267 = vmatprep.subr.bf16.mxu0 0
    %268 = vmatpush1.bf16.msra.mxu0 0
    %269 = vmatprep.subr.bf16.mxu0 0
    %270 = vmatpush1.bf16.msra.mxu0 0
    %271 = vmatprep.subr.bf16.mxu0 0
    %272 = vmatpush1.bf16.msra.mxu0 0
    %273 = vmatprep.subr.bf16.mxu0 0
    %274 = vmatpush1.bf16.msra.mxu0 0
    %275 = vmatprep.subr.bf16.mxu0 0
    %276 = vmatpush1.bf16.msra.mxu0 0
    %277 = vmatprep.subr.bf16.mxu0 0
    %278 = vmatpush1.bf16.msra.mxu0 0
    %279 = vmatprep.subr.bf16.mxu0 0
    %280 = vmatpush1.bf16.msra.mxu0 0
    %281 = vmatprep.subr.bf16.mxu0 0
    %282 = vmatpush1.bf16.msra.mxu0 0
    %283 = vmatprep.subr.bf16.mxu0 0
    %284 = vmatpush1.bf16.msra.mxu0 0
    %285 = vmatprep.mubr.bf16.mxu0 0
    %286 = vmatmul.mubr.bf16.gmra.mrb[0].mxu0 %v251
    %v287 = vpop.f32.mrb[0].mxu0
    %v288 = vadd.f32 %v224, %v287
    %v289 = vpop.f32.mrb[0].mxu0
    %v290 = vpop.f32.mrb[0].mxu0
    %v291 = vpop.f32.mrb[0].mxu0
    %292 = vdwg.mxu0
    %v293 = vld [vmem:[%s1] sm:$0xff]
    %s294 = sld [smem:[#allocation3 + %s209]]
    %v295 = vstv %s294
    %vm296 = vcmp.eq.s32.totalorder %v293, %v295
    %v297 = vsel %vm296, 1, 0
    %298 = vset.pattern.permute.xlu0 0
    %299 = vperm.xlu0 %298, %v297
    %v300 = vpop.permute.xlu0 %299
    %vm301 = vcmp.eq.s32.totalorder %v300, 1
    %v302 = vsel %vm301, %v288, -inf
    %303 = vst [vmem:[#allocation9] sm:$0xff] %v302
    %s304 = sadd.s32 %s209, 1
    %s305 = scalar_lea.vmem [#allocation7], 32
    %v306 = vld [vmem:[%s305] sm:$0xf]
    %v307 = vld [vmem:[%s305 + $0x4] sm:$0xf]
    %v308 = vld [vmem:[%s305 + $0x8] sm:$0xf]
    %v309 = vld [vmem:[%s305 + $0xc] sm:$0xf]
    %v310 = vld [vmem:[%s305 + $0x10] sm:$0xf]
    %v311 = vld [vmem:[%s305 + $0x14] sm:$0xf]
    %v312 = vld [vmem:[%s305 + $0x18] sm:$0xf]
    %v313 = vld [vmem:[%s305 + $0x1c] sm:$0xf]
    %s314 = scalar_lea.vmem %s8, %s304
    %v315 = vld [vmem:[%s314] sm:$0x1]
    %v317 = vlaneseq
    %v318 = vshrl.u32 %v317, 7
    %v319 = vsub.s32 0, %v318
    %v320 = vrot.slane %v315, %v319
    %323 = vrot.lane.b32.xlu0 %v207, 64
    %v324 = vpop.permute.xlu0 %323
    %v333 = vunpack.c.l.b16 %v306
    %v334 = vunpack.c.l.b16 %v307
    %v335 = vunpack.c.l.b16 %v308
    %v336 = vunpack.c.l.b16 %v309
    %v337 = vunpack.c.l.b16 %v310
    %v338 = vunpack.c.l.b16 %v311
    %v339 = vunpack.c.l.b16 %v312
    %v340 = vunpack.c.l.b16 %v313
    %v341 = vpack.c.b16 %v334, %v333
    %v342 = vpack.c.b16 %v336, %v335
    %v343 = vpack.c.b16 %v338, %v337
    %v344 = vpack.c.b16 %v340, %v339
    %v350 = vsel %vm67, %v324, 0
    %352 = vmatprep.subr.bf16.mxu0 0
    %353 = vmatpush1.bf16.msra.mxu0 %v341
    %354 = vmatprep.subr.bf16.mxu0 0
    %355 = vmatpush1.bf16.msra.mxu0 %v342
    %356 = vmatprep.subr.bf16.mxu0 0
    %357 = vmatpush1.bf16.msra.mxu0 %v343
    %358 = vmatprep.subr.bf16.mxu0 0
    %359 = vmatpush1.bf16.msra.mxu0 %v344
    %360 = vmatprep.subr.bf16.mxu0 0
    %361 = vmatpush1.bf16.msra.mxu0 0
    %362 = vmatprep.subr.bf16.mxu0 0
    %363 = vmatpush1.bf16.msra.mxu0 0
    %364 = vmatprep.subr.bf16.mxu0 0
    %365 = vmatpush1.bf16.msra.mxu0 0
    %366 = vmatprep.subr.bf16.mxu0 0
    %367 = vmatpush1.bf16.msra.mxu0 0
    %368 = vmatprep.subr.bf16.mxu0 0
    %369 = vmatpush1.bf16.msra.mxu0 0
    %370 = vmatprep.subr.bf16.mxu0 0
    %371 = vmatpush1.bf16.msra.mxu0 0
    %372 = vmatprep.subr.bf16.mxu0 0
    %373 = vmatpush1.bf16.msra.mxu0 0
    %374 = vmatprep.subr.bf16.mxu0 0
    %375 = vmatpush1.bf16.msra.mxu0 0
    %376 = vmatprep.subr.bf16.mxu0 0
    %377 = vmatpush1.bf16.msra.mxu0 0
    %378 = vmatprep.subr.bf16.mxu0 0
    %379 = vmatpush1.bf16.msra.mxu0 0
    %380 = vmatprep.subr.bf16.mxu0 0
    %381 = vmatpush1.bf16.msra.mxu0 0
    %382 = vmatprep.subr.bf16.mxu0 0
    %383 = vmatpush1.bf16.msra.mxu0 0
    %384 = vmatprep.mubr.bf16.mxu0 0
    %385 = vmatmul.mubr.bf16.gmra.mrb[0].mxu0 %v350
    %v386 = vpop.f32.mrb[0].mxu0
    %v387 = vadd.f32 %v320, %v386
    %v388 = vpop.f32.mrb[0].mxu0
    %v389 = vpop.f32.mrb[0].mxu0
    %v390 = vpop.f32.mrb[0].mxu0
    %391 = vdwg.mxu0
    %v392 = vld [vmem:[%s1] sm:$0xff]
    %s393 = sld [smem:[#allocation3 + %s304]]
    %v394 = vstv %s393
    %vm395 = vcmp.eq.s32.totalorder %v392, %v394
    %v396 = vsel %vm395, 1, 0
    %397 = vset.pattern.permute.xlu0 0
    %398 = vperm.xlu0 %397, %v396
    %v399 = vpop.permute.xlu0 %398
    %vm400 = vcmp.eq.s32.totalorder %v399, 1
    %v401 = vsel %vm400, %v387, -inf
    %s402 = scalar_lea.vmem [#allocation9], 8
    %403 = vst [vmem:[%s402] sm:$0xff] %v401
    %s404 = sadd.s32 %s209, 2
    %s405 = scalar_lea.vmem [#allocation7], 64
    %v406 = vld [vmem:[%s405] sm:$0xf]
    %v407 = vld [vmem:[%s405 + $0x4] sm:$0xf]
    %v408 = vld [vmem:[%s405 + $0x8] sm:$0xf]
    %v409 = vld [vmem:[%s405 + $0xc] sm:$0xf]
    %v410 = vld [vmem:[%s405 + $0x10] sm:$0xf]
    %v411 = vld [vmem:[%s405 + $0x14] sm:$0xf]
    %v412 = vld [vmem:[%s405 + $0x18] sm:$0xf]
    %v413 = vld [vmem:[%s405 + $0x1c] sm:$0xf]
    %s414 = scalar_lea.vmem %s8, %s404
    %v415 = vld [vmem:[%s414] sm:$0x1]
    %v417 = vlaneseq
    %v418 = vshrl.u32 %v417, 7
    %v419 = vsub.s32 0, %v418
    %v420 = vrot.slane %v415, %v419
    %v430 = vunpack.c.l.b16 %v406
    %v431 = vunpack.c.l.b16 %v407
    %v432 = vunpack.c.l.b16 %v408
    %v433 = vunpack.c.l.b16 %v409
    %v434 = vunpack.c.l.b16 %v410
    %v435 = vunpack.c.l.b16 %v411
    %v436 = vunpack.c.l.b16 %v412
    %v437 = vunpack.c.l.b16 %v413
    %v438 = vpack.c.b16 %v431, %v430
    %v439 = vpack.c.b16 %v433, %v432
    %v440 = vpack.c.b16 %v435, %v434
    %v441 = vpack.c.b16 %v437, %v436
    %v447 = vsel %vm67, %v208, 0
    %449 = vmatprep.subr.bf16.mxu0 0
    %450 = vmatpush1.bf16.msra.mxu0 %v438
    %451 = vmatprep.subr.bf16.mxu0 0
    %452 = vmatpush1.bf16.msra.mxu0 %v439
    %453 = vmatprep.subr.bf16.mxu0 0
    %454 = vmatpush1.bf16.msra.mxu0 %v440
    %455 = vmatprep.subr.bf16.mxu0 0
    %456 = vmatpush1.bf16.msra.mxu0 %v441
    %457 = vmatprep.subr.bf16.mxu0 0
    %458 = vmatpush1.bf16.msra.mxu0 0
    %459 = vmatprep.subr.bf16.mxu0 0
    %460 = vmatpush1.bf16.msra.mxu0 0
    %461 = vmatprep.subr.bf16.mxu0 0
    %462 = vmatpush1.bf16.msra.mxu0 0
    %463 = vmatprep.subr.bf16.mxu0 0
    %464 = vmatpush1.bf16.msra.mxu0 0
    %465 = vmatprep.subr.bf16.mxu0 0
    %466 = vmatpush1.bf16.msra.mxu0 0
    %467 = vmatprep.subr.bf16.mxu0 0
    %468 = vmatpush1.bf16.msra.mxu0 0
    %469 = vmatprep.subr.bf16.mxu0 0
    %470 = vmatpush1.bf16.msra.mxu0 0
    %471 = vmatprep.subr.bf16.mxu0 0
    %472 = vmatpush1.bf16.msra.mxu0 0
    %473 = vmatprep.subr.bf16.mxu0 0
    %474 = vmatpush1.bf16.msra.mxu0 0
    %475 = vmatprep.subr.bf16.mxu0 0
    %476 = vmatpush1.bf16.msra.mxu0 0
    %477 = vmatprep.subr.bf16.mxu0 0
    %478 = vmatpush1.bf16.msra.mxu0 0
    %479 = vmatprep.subr.bf16.mxu0 0
    %480 = vmatpush1.bf16.msra.mxu0 0
    %481 = vmatprep.mubr.bf16.mxu0 0
    %482 = vmatmul.mubr.bf16.gmra.mrb[0].mxu0 %v447
    %v483 = vpop.f32.mrb[0].mxu0
    %v484 = vadd.f32 %v420, %v483
    %v485 = vpop.f32.mrb[0].mxu0
    %v486 = vpop.f32.mrb[0].mxu0
    %v487 = vpop.f32.mrb[0].mxu0
    %488 = vdwg.mxu0
    %v489 = vld [vmem:[%s1] sm:$0xff]
    %s490 = sld [smem:[#allocation3 + %s404]]
    %v491 = vstv %s490
    %vm492 = vcmp.eq.s32.totalorder %v489, %v491
    %v493 = vsel %vm492, 1, 0
    %494 = vset.pattern.permute.xlu0 0
    %495 = vperm.xlu0 %494, %v493
    %v496 = vpop.permute.xlu0 %495
    %vm497 = vcmp.eq.s32.totalorder %v496, 1
    %v498 = vsel %vm497, %v484, -inf
    %s499 = scalar_lea.vmem [#allocation9], 16
    %500 = vst [vmem:[%s499] sm:$0xff] %v498
    %s501 = sadd.s32 %s209, 3
    %s502 = scalar_lea.vmem [#allocation7], 96
    %v503 = vld [vmem:[%s502] sm:$0xf]
    %v504 = vld [vmem:[%s502 + $0x4] sm:$0xf]
    %v505 = vld [vmem:[%s502 + $0x8] sm:$0xf]
    %v506 = vld [vmem:[%s502 + $0xc] sm:$0xf]
    %v507 = vld [vmem:[%s502 + $0x10] sm:$0xf]
    %v508 = vld [vmem:[%s502 + $0x14] sm:$0xf]
    %v509 = vld [vmem:[%s502 + $0x18] sm:$0xf]
    %v510 = vld [vmem:[%s502 + $0x1c] sm:$0xf]
    %s511 = scalar_lea.vmem %s8, %s501
    %v512 = vld [vmem:[%s511] sm:$0x1]
    %v514 = vlaneseq
    %v515 = vshrl.u32 %v514, 7
    %v516 = vsub.s32 0, %v515
    %v517 = vrot.slane %v512, %v516
    %520 = vrot.lane.b32.xlu0 %v208, 64
    %v521 = vpop.permute.xlu0 %520
    %v530 = vunpack.c.l.b16 %v503
    %v531 = vunpack.c.l.b16 %v504
    %v532 = vunpack.c.l.b16 %v505
    %v533 = vunpack.c.l.b16 %v506
    %v534 = vunpack.c.l.b16 %v507
    %v535 = vunpack.c.l.b16 %v508
    %v536 = vunpack.c.l.b16 %v509
    %v537 = vunpack.c.l.b16 %v510
    %v538 = vpack.c.b16 %v531, %v530
    %v539 = vpack.c.b16 %v533, %v532
    %v540 = vpack.c.b16 %v535, %v534
    %v541 = vpack.c.b16 %v537, %v536
    %v547 = vsel %vm67, %v521, 0
    %549 = vmatprep.subr.bf16.mxu0 0
    %550 = vmatpush1.bf16.msra.mxu0 %v538
    %551 = vmatprep.subr.bf16.mxu0 0
    %552 = vmatpush1.bf16.msra.mxu0 %v539
    %553 = vmatprep.subr.bf16.mxu0 0
    %554 = vmatpush1.bf16.msra.mxu0 %v540
    %555 = vmatprep.subr.bf16.mxu0 0
    %556 = vmatpush1.bf16.msra.mxu0 %v541
    %557 = vmatprep.subr.bf16.mxu0 0
    %558 = vmatpush1.bf16.msra.mxu0 0
    %559 = vmatprep.subr.bf16.mxu0 0
    %560 = vmatpush1.bf16.msra.mxu0 0
    %561 = vmatprep.subr.bf16.mxu0 0
    %562 = vmatpush1.bf16.msra.mxu0 0
    %563 = vmatprep.subr.bf16.mxu0 0
    %564 = vmatpush1.bf16.msra.mxu0 0
    %565 = vmatprep.subr.bf16.mxu0 0
    %566 = vmatpush1.bf16.msra.mxu0 0
    %567 = vmatprep.subr.bf16.mxu0 0
    %568 = vmatpush1.bf16.msra.mxu0 0
    %569 = vmatprep.subr.bf16.mxu0 0
    %570 = vmatpush1.bf16.msra.mxu0 0
    %571 = vmatprep.subr.bf16.mxu0 0
    %572 = vmatpush1.bf16.msra.mxu0 0
    %573 = vmatprep.subr.bf16.mxu0 0
    %574 = vmatpush1.bf16.msra.mxu0 0
    %575 = vmatprep.subr.bf16.mxu0 0
    %576 = vmatpush1.bf16.msra.mxu0 0
    %577 = vmatprep.subr.bf16.mxu0 0
    %578 = vmatpush1.bf16.msra.mxu0 0
    %579 = vmatprep.subr.bf16.mxu0 0
    %580 = vmatpush1.bf16.msra.mxu0 0
    %581 = vmatprep.mubr.bf16.mxu0 0
    %582 = vmatmul.mubr.bf16.gmra.mrb[0].mxu0 %v547
    %v583 = vpop.f32.mrb[0].mxu0
    %v584 = vadd.f32 %v517, %v583
    %v585 = vpop.f32.mrb[0].mxu0
    %v586 = vpop.f32.mrb[0].mxu0
    %v587 = vpop.f32.mrb[0].mxu0
    %588 = vdwg.mxu0
    %v589 = vld [vmem:[%s1] sm:$0xff]
    %s590 = sld [smem:[#allocation3 + %s501]]
    %v591 = vstv %s590
    %vm592 = vcmp.eq.s32.totalorder %v589, %v591
    %v593 = vsel %vm592, 1, 0
    %594 = vset.pattern.permute.xlu0 0
    %595 = vperm.xlu0 %594, %v593
    %v596 = vpop.permute.xlu0 %595
    %vm597 = vcmp.eq.s32.totalorder %v596, 1
    %v598 = vsel %vm597, %v584, -inf
    %s599 = scalar_lea.vmem [#allocation9], 24
    %600 = vst [vmem:[%s599] sm:$0xff] %v598
    // Predicated region
    $region42: #{fused_predict.1} parent=1 // pred_check
      _
    $region43: #{fused_predict.1} parent=1 // pred_check_branch
      %602 = sbr.rel (0) target = $region45
    $region44: #{fused_predict.1} parent=1 // pred_region
      %s604 = ssub.s32 512, 512
      %605 = vsyncadd [#allocation6], %s604
      %s606 = sshll.u32 [#allocation9], 4
      %s607 = int_to_ptr.vmem [resolvable:$true] %s606
      %612 = dma.vmem_to_hbm [thread:$0]  %s607, 512, %s9, [#allocation6], 128, 128, 8
    $region45: #{fused_predict.1} parent=1 // pred_fallthru
      _
    // Predicated region
    $region46: #{fused_predict.1} parent=1 // pred_check
      _
    $region47: #{fused_predict.1} parent=1 // pred_check_branch
      %614 = sbr.rel (0) target = $region49
    $region48: #{fused_predict.1} parent=1 // pred_region
      %615 = dma.done [#allocation6], 512
    $region49: #{fused_predict.1} parent=1 // pred_fallthru
      _
    %616 = vsyncpa [#allocation5], 1
    %617 = vsyncpa [#allocation8], 1
    %618 = vsyncpa [#allocation6], 1

</llo_original>
